<compile_context>
chip_gen: v7x
topology: tpu7x:2x2x1
jax: 0.10.0
libtpu: 0.0.40
codegen_flags: <defaults>
</compile_context>

<pallas_src>
import functools

import jax
import jax.numpy as jnp
from jax.experimental import pallas as pl
from jax.experimental.pallas import tpu as pltpu

_LANE = 128
_VMEM_LIMIT = 32 * 1024 * 1024        # raise v5e's 16 MiB default; safe on all chips
_BLOCK_BYTES_CAP = 24 * 1024 * 1024   # budget for double-buffered in+out blocks


def _round_up(a: int, b: int) -> int:
    return -(-a // b) * b


def _is_dual_core_chip() -> bool:
    """True on chips with 2 TensorCores per chip (v7x)."""
    try:
        kind = jax.devices()[0].device_kind.lower()
    except Exception:
        return False
    return "v7" in kind or "tpu7" in kind


def _msample_kernel(x_ref, o_ref, *, delt: float, inv_delt: float, q: float):
    x = x_ref[...].astype(jnp.float32)
    # inv_delt is an exact power of two, so x * inv_delt == x / delt bitwise.
    mm = jnp.round(x * inv_delt)              # round-half-to-even == torch.round
    mm = jnp.clip(mm, -q - 1.0, q)
    o_ref[...] = delt * mm


def _msample_jnp(x, delt, inv_delt, q):
    mm = jnp.clip(jnp.round(x.astype(jnp.float32) * inv_delt), -q - 1.0, q)
    return delt * mm


def _msample_2d(x2d, *, delt, inv_delt, q):
    """Run the Pallas kernel over a lane-dense (rows, 128) slab -> f32 (rows, 128)."""
    rows = x2d.shape[0]
    itemsize = x2d.dtype.itemsize
    sublane = max(8, 32 // itemsize)          # layout-native sublane multiple

    # ~4 MiB of input per grid step (f32 -> 8192 rows, bf16 -> 16384 rows),
    # capped so double-buffered in+out VMEM stays under _BLOCK_BYTES_CAP.
    max_block_rows = max(8192, (4 << 20) // (_LANE * itemsize))
    max_block_rows = min(max_block_rows,
                         _BLOCK_BYTES_CAP // (2 * _LANE * (itemsize + 4)))
    max_block_rows = max(sublane, (max_block_rows // sublane) * sublane)

    dual_core = _is_dual_core_chip()

    if dual_core and 2 * sublane <= rows < 2 * max_block_rows:
        # v7x: split medium inputs into >=2 blocks so both cores get work.
        block_rows = min(rows, _round_up(pl.cdiv(rows, 2), sublane))
    elif rows <= max_block_rows:
        block_rows = rows                     # single full-extent block
    else:
        block_rows = max_block_rows           # partial last block is masked

    grid = (pl.cdiv(rows, block_rows),)
    kernel = functools.partial(_msample_kernel, delt=delt, inv_delt=inv_delt, q=q)

    total = rows * _LANE
    cost = pl.CostEstimate(flops=5 * total, transcendentals=0,
                           bytes_accessed=total * (itemsize + 4))

    if dual_core:
        dim_sem = (getattr(pltpu, "CORE_PARALLEL", "parallel"),)
    else:
        dim_sem = ("parallel",)

    def _run(dsem):
        return pl.pallas_call(
            kernel,
            out_shape=jax.ShapeDtypeStruct((rows, _LANE), jnp.float32),
            grid_spec=pltpu.PrefetchScalarGridSpec(
                num_scalar_prefetch=0,
                grid=grid,
                in_specs=[pl.BlockSpec((block_rows, _LANE), lambda i: (i, 0))],
                out_specs=pl.BlockSpec((block_rows, _LANE), lambda i: (i, 0)),
            ),
            compiler_params=pltpu.CompilerParams(
                dimension_semantics=dsem,
                vmem_limit_bytes=_VMEM_LIMIT,
            ),
            cost_estimate=cost,
        )(x2d)

    try:
        return _run(dim_sem)
    except Exception:
        if dim_sem == ("parallel",):
            raise
        # Conservative fallback if CORE_PARALLEL is rejected on this runtime.
        return _run(("parallel",))


def _msample_impl(x, N, m):
    delt = float(2.0 ** (-m))
    inv_delt = float(2.0 ** m)
    q = float(2 ** (N - 1) - 1)

    orig_shape = x.shape
    total = x.size
    if total == 0:
        return jnp.zeros(orig_shape, jnp.float32)

    flat = x.reshape(-1)                      # zero-copy flatten
    bulk_rows = total // _LANE
    bulk = bulk_rows * _LANE

    if bulk_rows == 0:
        # Fewer than 128 elements: not worth a kernel launch.
        return _msample_jnp(flat, delt, inv_delt, q).reshape(orig_shape)

    if bulk == total:
        # Fast path: zero-copy reshape in, zero-copy reshape out (no slices).
        out2d = _msample_2d(flat.reshape(bulk_rows, _LANE),
                            delt=delt, inv_delt=inv_delt, q=q)
        return out2d.reshape(orig_shape)

    # Ragged path: lane-aligned bulk through the kernel, <128-element tail in jnp.
    out_bulk = _msample_2d(flat[:bulk].reshape(bulk_rows, _LANE),
                           delt=delt, inv_delt=inv_delt, q=q)
    out_tail = _msample_jnp(flat[bulk:], delt, inv_delt, q)
    return jnp.concatenate([out_bulk.reshape(-1), out_tail]).reshape(orig_shape)


@functools.partial(jax.custom_vjp, nondiff_argnums=(1, 2))
def msample(x, N=16, m=6):
    """mSample forward: float32 output, same shape as x."""
    return _msample_impl(x, N, m)


def _msample_fwd(x, N, m):
    return _msample_impl(x, N, m), jnp.zeros((), x.dtype)


def _msample_bwd(N, m, proto, g):
    # Straight-through estimator, matching mSample_F.backward (returns g).
    return (g.astype(proto.dtype),)


msample.defvjp(_msample_fwd, _msample_bwd)


def msample_ref(x, N=16, m=6):
    """Pure-JAX reference (mirrors the PyTorch forward)."""
    delt = 2.0 ** (-m)
    q = float(2 ** (N - 1) - 1)
    M = jnp.clip(jnp.round(x.astype(jnp.float32) / delt), -q - 1.0, q)
    return delt * M


if __name__ == "__main__":
    key = jax.random.PRNGKey(0)
    k1, k2, k3, k4 = jax.random.split(key, 4)

    # 1) CIFAR-style NCHW activation, f32, lane-divisible copy-free fast path.
    x1 = jax.random.normal(k1, (2, 4, 16, 16), dtype=jnp.float32) * 3.0
    # 2) Ragged element count (not a multiple of 128) -> bulk kernel + tiny tail.
    x2 = jax.random.normal(k2, (3, 5, 7, 11), dtype=jnp.float32) * 2.0
    # 3) Different (N, m) configuration that exercises clamping.
    x3 = jax.random.normal(k3, (1, 4, 20, 32), dtype=jnp.float32) * 4.0
    # 4) bf16 input kept narrow into the kernel, cast to f32 inside.
    x4 = (jax.random.normal(k4, (2, 8, 32, 32), dtype=jnp.float32) * 4.0
          ).astype(jnp.bfloat16)

    cases = [(x1, 16, 6), (x2, 16, 6), (x3, 8, 4), (x4, 16, 6)]
    for x, N, mm in cases:
        out = jax.block_until_ready(msample(x, N, mm))
        ref = msample_ref(x, N=N, m=mm)
        assert out.shape == x.shape, (out.shape, x.shape)
        assert out.dtype == jnp.float32
        assert jnp.array_equal(out, ref), f"mismatch vs reference (N={N}, m={mm})"

    # Straight-through gradient (identity), matching mSample_F.backward.
    g = jax.block_until_ready(jax.grad(lambda t: jnp.sum(msample(t, 16, 6)))(x1))
    assert jnp.array_equal(g, jnp.ones_like(x1))

    print("KERNEL_OK")
</pallas_src>

<mosaic_0001>
module attributes {stable_mosaic.version = 11 : i64} {
  func.func @_msample_kernel(%arg0: i32, %arg1: memref<16x128xf32, #tpu.memory_space<vmem>>, %arg2: memref<16x128xf32, #tpu.memory_space<vmem>>) attributes {dimension_semantics = [#tpu.dimension_semantics<parallel>], iteration_bounds = array<i64: 1>, scalar_prefetch = 0 : i64, scratch_operands = 0 : i64, tpu.core_type = #tpu.core_type<tc>, window_params = [{transform_indices = @transform_0, window_bounds = array<i64: 16, 128>}, {transform_indices = @transform_1, window_bounds = array<i64: 16, 128>}]} {
    %c0 = arith.constant 0 : index
    %c0_0 = arith.constant 0 : index
    %0 = vector.load %arg1[%c0, %c0_0] : memref<16x128xf32, #tpu.memory_space<vmem>>, vector<16x128xf32>
    %cst = arith.constant 6.400000e+01 : f32
    %1 = vector.broadcast %cst : f32 to vector<16x128xf32>
    %2 = arith.mulf %0, %1 : vector<16x128xf32>
    %3 = math.roundeven %2 : vector<16x128xf32>
    %cst_1 = arith.constant -3.276800e+04 : f32
    %cst_2 = arith.constant 3.276700e+04 : f32
    %4 = vector.broadcast %cst_1 : f32 to vector<16x128xf32>
    %5 = arith.maximumf %4, %3 : vector<16x128xf32>
    %6 = vector.broadcast %cst_2 : f32 to vector<16x128xf32>
    %7 = arith.minimumf %6, %5 : vector<16x128xf32>
    %cst_3 = arith.constant 1.562500e-02 : f32
    %8 = vector.broadcast %cst_3 : f32 to vector<16x128xf32>
    %9 = arith.mulf %8, %7 : vector<16x128xf32>
    %c0_4 = arith.constant 0 : index
    %c0_5 = arith.constant 0 : index
    %10 = vector.load %arg2[%c0_4, %c0_5] : memref<16x128xf32, #tpu.memory_space<vmem>>, vector<16x128xf32>
    tpu.vector_store %arg2[%c0_4, %c0_5], %9 {strides = array<i32>} : memref<16x128xf32, #tpu.memory_space<vmem>>, vector<16x128xf32>,
    return
  }
  func.func @transform_0(%arg0: i32) -> (i32, i32) {
    %c0_i32 = arith.constant 0 : i32
    %c0_i32_0 = arith.constant 0 : i32
    return %arg0, %c0_i32 : i32, i32
  }
  func.func @transform_1(%arg0: i32) -> (i32, i32) {
    %c0_i32 = arith.constant 0 : i32
    %c0_i32_0 = arith.constant 0 : i32
    return %arg0, %c0_i32 : i32, i32
  }
}

</mosaic_0001>

<llo_original>
// kernel: tpu_custom_call.1
$region0: #{tpu_custom_call.1}
  #allocation0 [shape = 'u32[]', space=smem, size = 0x4, offset = 0x4, fixed_abs, tag = 'smem constant byte address 0x4 - core index']
  #allocation1 [shape = 'u32[144,128]{1,0:T(1,128)}', space=vmem, size = 0x12000, scoped, tag = 'internal scratch']
  %s0 = inlined_call_operand.hbm [shape: f32[16,128], index: 0, kind: input, shape index: {}]
  %s1 = inlined_call_operand.hbm [shape: f32[16,128], index: 1, kind: output, shape index: {}]
  %s2 = sld [smem:[#allocation0]]
  $region18: #{tpu_custom_call.1} parent=0
    _
  %s4 = ssub.s32 1, %s2
  %s5 = scalar_select 0, %s4, %s2
  $region1: #{tpu_custom_call.1} parent=0
    #allocation2 [shape = 'u8[8192]{0}', space=vmem, size = 0x2000, scoped, tag = 'input window, operand 0, single buffered']
    #allocation3 [shape = 's32[1]{0}', space=sflag, size = 0x4, scoped, tag = 'scoped memory for tpu_custom_call.1']
    #allocation4 [shape = 's32[1]{0}', space=sflag, size = 0x4, scoped, tag = 'scoped memory for tpu_custom_call.1']
    #allocation5 [shape = 'u8[8192]{0}', space=vmem, size = 0x2000, scoped, tag = 'output window, operand 0, single buffered']
    %6 = vsyncpa [#allocation3], 0
    %7 = vsyncpa [#allocation4], 0
    // Predicated region
    $region2: #{tpu_custom_call.1} parent=1 // pred_check
      _
    $region3: #{tpu_custom_call.1} parent=1 // pred_check_branch
      %9 = sbr.rel (0) target = $region5
    $region4: #{tpu_custom_call.1} parent=1 // pred_region
      %s11 = ssub.s32 256, 256
      %12 = vsyncadd [#allocation3], %s11
      %s13 = sshll.u32 [#allocation2], 4
      %s14 = int_to_ptr.vmem [resolvable:$true] %s13
      %19 = dma.hbm_to_vmem [thread:$0]  %s0, 256, %s14, [#allocation3], 128, 128, 8
    $region5: #{tpu_custom_call.1} parent=1 // pred_fallthru
      _
    // Predicated region
    $region6: #{tpu_custom_call.1} parent=1 // pred_check
      _
    $region7: #{tpu_custom_call.1} parent=1 // pred_check_branch
      %21 = sbr.rel (0) target = $region9
    $region8: #{tpu_custom_call.1} parent=1 // pred_region
      %22 = dma.done [#allocation3], 256
    $region9: #{tpu_custom_call.1} parent=1 // pred_fallthru
      _
    %v23 = vld [vmem:[#allocation2] sm:$0xff]
    %v24 = vld [vmem:[#allocation2 + $0x8] sm:$0xff]
    %v25 = vmul.f32 %v23, 64.0
    %v26 = vmul.f32 %v24, 64.0
    %v27 = vround.ne.pseudo %v25
    %v28 = vround.ne.pseudo %v26
    %v29 = vmax.f32 %v27, -32768.0
    %v30 = vmax.f32 %v28, -32768.0
    %v31 = vmin.f32 %v29, 32767.0
    %v32 = vmin.f32 %v30, 32767.0
    %v33 = vmul.f32 %v31, 0.015625
    %v34 = vmul.f32 %v32, 0.015625
    %35 = vst [vmem:[#allocation5] sm:$0xff] %v33
    %36 = vst [vmem:[#allocation5 + $0x8] sm:$0xff] %v34
    // Predicated region
    $region10: #{tpu_custom_call.1} parent=1 // pred_check
      _
    $region11: #{tpu_custom_call.1} parent=1 // pred_check_branch
      %38 = sbr.rel (0) target = $region13
    $region12: #{tpu_custom_call.1} parent=1 // pred_region
      %s40 = ssub.s32 256, 256
      %41 = vsyncadd [#allocation4], %s40
      %s42 = sshll.u32 [#allocation5], 4
      %s43 = int_to_ptr.vmem [resolvable:$true] %s42
      %48 = dma.vmem_to_hbm [thread:$0]  %s43, 256, %s1, [#allocation4], 128, 128, 8
    $region13: #{tpu_custom_call.1} parent=1 // pred_fallthru
      _
    // Predicated region
    $region14: #{tpu_custom_call.1} parent=1 // pred_check
      _
    $region15: #{tpu_custom_call.1} parent=1 // pred_check_branch
      %50 = sbr.rel (0) target = $region17
    $region16: #{tpu_custom_call.1} parent=1 // pred_region
      %51 = dma.done [#allocation4], 256
    $region17: #{tpu_custom_call.1} parent=1 // pred_fallthru
      _
    %52 = vsyncpa [#allocation3], 1
    %53 = vsyncpa [#allocation4], 1

</llo_original>
